<compile_context>
chip_gen: v7x
topology: tpu7x:2x2x1
jax: 0.10.0
libtpu: 0.0.40
codegen_flags: <defaults>
</compile_context>

<pallas_src>
import functools

import jax
import jax.numpy as jnp
from jax.experimental import pallas as pl
from jax.experimental.pallas import tpu as pltpu

LANES = 128


def _swish_math(x):
    # Exact sigmoid via one tanh: sigmoid(x) = 0.5 * tanh(0.5 x) + 0.5.
    # For x -> -inf: tanh -> -1, sigmoid -> 0, swish -> nan only at x = -inf,
    # matching x * sigmoid(x).
    half = jnp.asarray(0.5, x.dtype)
    return x * (half * jnp.tanh(half * x) + half)


def _swish_kernel(x_ref, o_ref, *, compute_dtype):
    x = x_ref[...].astype(compute_dtype)
    o_ref[...] = _swish_math(x).astype(o_ref.dtype)


def _device_kind():
    try:
        return jax.devices()[0].device_kind.lower()
    except Exception:
        return ""


def _device_tuning():
    """(target_tile_bytes, vmem_limit_bytes) per TPU generation."""
    kind = _device_kind()
    if "v7" in kind or "7x" in kind:
        # 3.2 TB/s HBM: bigger tiles amortize the ~0.35us/step overhead.
        # 8 MiB tiles, double-buffered in+out ~= 32 MiB << 64 MiB physical VMEM.
        return 8 * 1024 * 1024, 48 * 1024 * 1024
    if "v6" in kind:
        return 4 * 1024 * 1024, 32 * 1024 * 1024
    # v5e / unknown: 2 MiB tiles already put step overhead under ~7%.
    return 2 * 1024 * 1024, 32 * 1024 * 1024


def _compute_dtype(dtype):
    # bf16 compute is native (and 2x denser per vreg) on v6e/v7x; v5e has no
    # bf16 VPU/EUP, so upcast there.  Everything else computes in f32.
    if dtype == jnp.bfloat16:
        kind = _device_kind()
        if "v5" in kind:
            return jnp.float32
        return jnp.bfloat16
    return jnp.float32


def _sublane_multiple(dtype):
    # Packed sublane tiling: 4-byte -> 8 rows, 2-byte -> 16, 1-byte -> 32.
    itemsize = jnp.dtype(dtype).itemsize
    return max(8, 32 // max(itemsize, 1))


def _swish_2d(x2d, *, tile_rows, compute_dtype, vmem_limit_bytes):
    rows, lanes = x2d.shape
    grid = (pl.cdiv(rows, tile_rows),)  # partial last block handled by Pallas
    return pl.pallas_call(
        functools.partial(_swish_kernel, compute_dtype=compute_dtype),
        out_shape=jax.ShapeDtypeStruct((rows, lanes), x2d.dtype),
        grid_spec=pltpu.PrefetchScalarGridSpec(
            num_scalar_prefetch=0,
            grid=grid,
            in_specs=[pl.BlockSpec((tile_rows, lanes), lambda i: (i, 0))],
            out_specs=pl.BlockSpec((tile_rows, lanes), lambda i: (i, 0)),
        ),
        compiler_params=pltpu.CompilerParams(
            dimension_semantics=("parallel",),
            vmem_limit_bytes=vmem_limit_bytes,
        ),
    )(x2d)


def swish(x):
    """Elementwise x * sigmoid(x) for floating-point inputs of any shape."""
    dtype = x.dtype
    if not jnp.issubdtype(dtype, jnp.floating):
        raise TypeError(f"swish expects a floating dtype, got {dtype}")
    orig_shape = x.shape
    n = x.size
    if n == 0:
        return x

    tile_bytes, vmem_limit = _device_tuning()
    compute_dtype = _compute_dtype(dtype)
    itemsize = jnp.dtype(dtype).itemsize
    subl = _sublane_multiple(dtype)

    # Large lane-dense tiles for this bandwidth-bound op.
    tr = max(subl, tile_bytes // (LANES * itemsize))
    tr = (tr // subl) * subl

    rows = n // LANES
    rem = n - rows * LANES

    if rem == 0:
        # Fast path: free reshapes only, no pad / no trailing slice.
        tr_eff = min(tr, ((rows + subl - 1) // subl) * subl)
        x2d = jnp.reshape(x, (rows, LANES))
        out2d = _swish_2d(
            x2d, tile_rows=tr_eff, compute_dtype=compute_dtype,
            vmem_limit_bytes=vmem_limit)
        return jnp.reshape(out2d, orig_shape)

    # Tail path: Pallas on the 128-aligned prefix; <128-element remainder in
    # plain jnp (avoids a full-tensor pad + trailing slice = ~3x HBM traffic).
    x_flat = jnp.ravel(x)
    if rows == 0:
        # Tiny tensor (< 128 elements): pure-jnp swish, same math/dtype policy.
        out = _swish_math(x_flat.astype(compute_dtype)).astype(dtype)
        return jnp.reshape(out, orig_shape)

    head = x_flat[: rows * LANES].reshape(rows, LANES)
    tail = x_flat[rows * LANES:]
    tr_eff = min(tr, ((rows + subl - 1) // subl) * subl)
    head_out = _swish_2d(
        head, tile_rows=tr_eff, compute_dtype=compute_dtype,
        vmem_limit_bytes=vmem_limit).reshape(-1)
    tail_out = _swish_math(tail.astype(compute_dtype)).astype(dtype)
    return jnp.reshape(jnp.concatenate([head_out, tail_out]), orig_shape)


if __name__ == "__main__":
    key = jax.random.PRNGKey(0)

    # NCHW activation, matching the PyTorch conv-layer usage.
    x = jax.random.normal(key, (2, 4, 16, 16), dtype=jnp.float32)
    y = swish(x)
    jax.block_until_ready(y)

    y_ref = x * jax.nn.sigmoid(x)
    assert y.shape == x.shape and y.dtype == x.dtype
    assert jnp.max(jnp.abs(y - y_ref)) < 1e-3

    # Also exercise the non-128-aligned tail path (Pallas prefix + jnp remainder).
    x_odd = jax.random.normal(jax.random.PRNGKey(1), (5, 7, 31), dtype=jnp.float32)
    y_odd = swish(x_odd)
    jax.block_until_ready(y_odd)
    y_odd_ref = x_odd * jax.nn.sigmoid(x_odd)
    assert y_odd.shape == x_odd.shape and y_odd.dtype == x_odd.dtype
    assert jnp.max(jnp.abs(y_odd - y_odd_ref)) < 1e-3

    print("KERNEL_OK")
</pallas_src>

<mosaic_0001>
module attributes {stable_mosaic.version = 11 : i64} {
  func.func @_swish_kernel(%arg0: i32, %arg1: memref<16x128xf32, #tpu.memory_space<vmem>>, %arg2: memref<16x128xf32, #tpu.memory_space<vmem>>) attributes {dimension_semantics = [#tpu.dimension_semantics<parallel>], iteration_bounds = array<i64: 1>, scalar_prefetch = 0 : i64, scratch_operands = 0 : i64, tpu.core_type = #tpu.core_type<tc>, window_params = [{transform_indices = @transform_0, window_bounds = array<i64: 16, 128>}, {transform_indices = @transform_1, window_bounds = array<i64: 16, 128>}]} {
    %c0 = arith.constant 0 : index
    %c0_0 = arith.constant 0 : index
    %0 = vector.load %arg1[%c0, %c0_0] : memref<16x128xf32, #tpu.memory_space<vmem>>, vector<16x128xf32>
    %cst = arith.constant 5.000000e-01 : f32
    %1 = vector.broadcast %cst : f32 to vector<16x128xf32>
    %2 = arith.mulf %1, %0 : vector<16x128xf32>
    %3 = math.tanh %2 : vector<16x128xf32>
    %cst_1 = arith.constant 5.000000e-01 : f32
    %4 = vector.broadcast %cst_1 : f32 to vector<16x128xf32>
    %5 = arith.mulf %4, %3 : vector<16x128xf32>
    %cst_2 = arith.constant 5.000000e-01 : f32
    %6 = vector.broadcast %cst_2 : f32 to vector<16x128xf32>
    %7 = arith.addf %5, %6 : vector<16x128xf32>
    %8 = arith.mulf %0, %7 : vector<16x128xf32>
    %c0_3 = arith.constant 0 : index
    %c0_4 = arith.constant 0 : index
    %9 = vector.load %arg2[%c0_3, %c0_4] : memref<16x128xf32, #tpu.memory_space<vmem>>, vector<16x128xf32>
    tpu.vector_store %arg2[%c0_3, %c0_4], %8 {strides = array<i32>} : memref<16x128xf32, #tpu.memory_space<vmem>>, vector<16x128xf32>,
    return
  }
  func.func @transform_0(%arg0: i32) -> (i32, i32) {
    %c0_i32 = arith.constant 0 : i32
    %c0_i32_0 = arith.constant 0 : i32
    return %arg0, %c0_i32 : i32, i32
  }
  func.func @transform_1(%arg0: i32) -> (i32, i32) {
    %c0_i32 = arith.constant 0 : i32
    %c0_i32_0 = arith.constant 0 : i32
    return %arg0, %c0_i32 : i32, i32
  }
}

</mosaic_0001>

<llo_original>
// kernel: tpu_custom_call.1
$region0: #{tpu_custom_call.1}
  #allocation0 [shape = 'u32[]', space=smem, size = 0x4, offset = 0x4, fixed_abs, tag = 'smem constant byte address 0x4 - core index']
  #allocation1 [shape = 'u32[144,128]{1,0:T(1,128)}', space=vmem, size = 0x12000, scoped, tag = 'internal scratch']
  %s0 = inlined_call_operand.hbm [shape: f32[16,128], index: 0, kind: input, shape index: {}]
  %s1 = inlined_call_operand.hbm [shape: f32[16,128], index: 1, kind: output, shape index: {}]
  %s2 = sld [smem:[#allocation0]]
  $region18: #{tpu_custom_call.1} parent=0
    _
  %s4 = ssub.s32 1, %s2
  %s5 = scalar_select 0, %s4, %s2
  $region1: #{tpu_custom_call.1} parent=0
    #allocation2 [shape = 'u8[8192]{0}', space=vmem, size = 0x2000, scoped, tag = 'input window, operand 0, single buffered']
    #allocation3 [shape = 's32[1]{0}', space=sflag, size = 0x4, scoped, tag = 'scoped memory for tpu_custom_call.1']
    #allocation4 [shape = 's32[1]{0}', space=sflag, size = 0x4, scoped, tag = 'scoped memory for tpu_custom_call.1']
    #allocation5 [shape = 'u8[8192]{0}', space=vmem, size = 0x2000, scoped, tag = 'output window, operand 0, single buffered']
    %6 = vsyncpa [#allocation3], 0
    %7 = vsyncpa [#allocation4], 0
    // Predicated region
    $region2: #{tpu_custom_call.1} parent=1 // pred_check
      _
    $region3: #{tpu_custom_call.1} parent=1 // pred_check_branch
      %9 = sbr.rel (0) target = $region5
    $region4: #{tpu_custom_call.1} parent=1 // pred_region
      %s11 = ssub.s32 256, 256
      %12 = vsyncadd [#allocation3], %s11
      %s13 = sshll.u32 [#allocation2], 4
      %s14 = int_to_ptr.vmem [resolvable:$true] %s13
      %19 = dma.hbm_to_vmem [thread:$0]  %s0, 256, %s14, [#allocation3], 128, 128, 8
    $region5: #{tpu_custom_call.1} parent=1 // pred_fallthru
      _
    // Predicated region
    $region6: #{tpu_custom_call.1} parent=1 // pred_check
      _
    $region7: #{tpu_custom_call.1} parent=1 // pred_check_branch
      %21 = sbr.rel (0) target = $region9
    $region8: #{tpu_custom_call.1} parent=1 // pred_region
      %22 = dma.done [#allocation3], 256
    $region9: #{tpu_custom_call.1} parent=1 // pred_fallthru
      _
    %v23 = vld [vmem:[#allocation2] sm:$0xff]
    %v24 = vld [vmem:[#allocation2 + $0x8] sm:$0xff]
    %v25 = vmul.f32 %v23, 0.5
    %v26 = vmul.f32 %v24, 0.5
    %v27 = vtanh.pop %v25
    %v28 = vtanh.pop %v26
    %v29 = vmul.f32 %v27, 0.5
    %v30 = vmul.f32 %v28, 0.5
    %v31 = vadd.f32 %v29, 0.5
    %v32 = vadd.f32 %v30, 0.5
    %v33 = vmul.f32 %v23, %v31
    %v34 = vmul.f32 %v24, %v32
    %35 = vst [vmem:[#allocation5] sm:$0xff] %v33
    %36 = vst [vmem:[#allocation5 + $0x8] sm:$0xff] %v34
    // Predicated region
    $region10: #{tpu_custom_call.1} parent=1 // pred_check
      _
    $region11: #{tpu_custom_call.1} parent=1 // pred_check_branch
      %38 = sbr.rel (0) target = $region13
    $region12: #{tpu_custom_call.1} parent=1 // pred_region
      %s40 = ssub.s32 256, 256
      %41 = vsyncadd [#allocation4], %s40
      %s42 = sshll.u32 [#allocation5], 4
      %s43 = int_to_ptr.vmem [resolvable:$true] %s42
      %48 = dma.vmem_to_hbm [thread:$0]  %s43, 256, %s1, [#allocation4], 128, 128, 8
    $region13: #{tpu_custom_call.1} parent=1 // pred_fallthru
      _
    // Predicated region
    $region14: #{tpu_custom_call.1} parent=1 // pred_check
      _
    $region15: #{tpu_custom_call.1} parent=1 // pred_check_branch
      %50 = sbr.rel (0) target = $region17
    $region16: #{tpu_custom_call.1} parent=1 // pred_region
      %51 = dma.done [#allocation4], 256
    $region17: #{tpu_custom_call.1} parent=1 // pred_fallthru
      _
    %52 = vsyncpa [#allocation3], 1
    %53 = vsyncpa [#allocation4], 1

</llo_original>
